<compile_context>
chip_gen: v7x
topology: tpu7x:2x2x1
jax: 0.10.0
libtpu: 0.0.40
codegen_flags: <defaults>
</compile_context>

<pallas_src>
import jax
import jax.numpy as jnp
from jax.experimental import pallas as pl
from jax.experimental.pallas import tpu as pltpu


def _conv_row_gemm_kernel(x_ref, w_ref, b_ref, o_ref):
    """out = relu(sum_r x_tap_r @ w_tap_r + b) for one (image-block, col-tile).

    x_ref: (stride, imgs, Hphase, Kpad)  phase-split padded input rows
    w_ref: (KH, Kpad, block_n)           per-tap Toeplitz-expanded weights
    b_ref: (1, block_n)                  bias tiled over Wo
    o_ref: (imgs, Ho, block_n)           lane-dense output tile
    """
    stride_h, imgs, _, k_pad = x_ref.shape
    kh = w_ref.shape[0]
    _, h_out, block_n = o_ref.shape

    acc = jnp.zeros((imgs * h_out, block_n), dtype=jnp.float32)
    for r in range(kh):                       # static, unrolled tap loop
        phase, off = r % stride_h, r // stride_h
        # Rows ho*stride + r of the padded image == phase (r % stride),
        # offsets r//stride + [0, Ho) -- a contiguous, unit-stride slice.
        lhs = x_ref[phase, :, pl.ds(off, h_out), :]        # (imgs, Ho, Kpad)
        lhs = lhs.reshape(imgs * h_out, k_pad)
        acc = acc + jnp.dot(lhs, w_ref[r],
                            preferred_element_type=jnp.float32)
    acc = acc + b_ref[...].astype(jnp.float32)             # f32 epilogue
    acc = jnp.maximum(acc, 0.0)
    o_ref[...] = acc.reshape(imgs, h_out, block_n).astype(o_ref.dtype)


def _round_up(x, m):
    return (x + m - 1) // m * m


def _vmem_limit_bytes(needed_bytes):
    """Generation-aware scoped-VMEM limit (v5e/v6e: 128 MiB, v7x: 64 MiB)."""
    try:
        cap = int(pltpu.get_tpu_info().vmem_capacity_bytes)
    except Exception:
        cap = 64 * 1024 * 1024             # conservative: v7x per-TensorCore
    budget = (cap * 3) // 4                # headroom for Mosaic internal scratch
    return int(min(budget, max(32 * 1024 * 1024, 2 * needed_bytes)))


def conv_relu(x_nchw, weight_oihw, bias, stride, padding, *,
              block_m_target=256, block_n_target=512, mxu_dtype=None):
    """Equivalent of the PyTorch `conv` module forward (Conv2d + ReLU).

    x_nchw:      (N, Cin, H, W)
    weight_oihw: (Cout, Cin, KH, KW)
    bias:        (Cout,)
    mxu_dtype:   optionally jnp.bfloat16 to feed the MXU in bf16 (f32 accum).
    returns:     (N, Cout, Ho, Wo)  NCHW, matching PyTorch semantics.
    """
    n, c_in, h, w = x_nchw.shape
    c_out, _, kh, kw = weight_oihw.shape
    h_out = (h + 2 * padding - kh) // stride + 1
    w_out = (w + 2 * padding - kw) // stride + 1
    h_p = h + 2 * padding
    w_pad = w + 2 * padding

    # ---------------- tile selection ----------------------------------------
    k_raw = w_pad * c_in
    k_pad = _round_up(k_raw, 128)              # lane/MXU-aligned per-tap K
    n_cols = w_out * c_out
    block_n = min(_round_up(block_n_target, 128), _round_up(n_cols, 128))
    n_cols_pad = _round_up(n_cols, block_n)
    num_n_tiles = n_cols_pad // block_n

    # block_m = imgs_per_blk * Ho output rows; target the MXU height but keep
    # >= 2 parallel grid steps (v7x megacore) when the problem allows it.
    if h_out % 8 == 0:
        imgs_per_blk = max(1, min(n, block_m_target // max(1, h_out)))
    else:
        imgs_per_blk = 1                       # keep reshapes sublane-aligned
    num_m_tiles = pl.cdiv(n, imgs_per_blk)
    if num_m_tiles * num_n_tiles < 2 and imgs_per_blk > 1:
        imgs_per_blk = max(1, imgs_per_blk // 2)
        num_m_tiles = pl.cdiv(n, imgs_per_blk)
    n_img_pad = num_m_tiles * imgs_per_blk

    h_phase = (h_p + stride - 1) // stride     # padded rows per stride phase

    in_dtype = jnp.float32 if mxu_dtype is None else jnp.dtype(mxu_dtype)
    itm = jnp.dtype(in_dtype).itemsize

    # ---------------- layout plumbing in plain JAX (fused by XLA) -----------
    x_nhwc = jnp.transpose(x_nchw, (0, 2, 3, 1)).astype(jnp.float32)
    x_p = jnp.pad(x_nhwc,
                  ((0, 0), (padding, padding), (padding, padding), (0, 0)))
    x_p = x_p.reshape(n, h_p, k_raw)
    x_p = jnp.pad(x_p, ((0, n_img_pad - n),
                        (0, stride * h_phase - h_p),
                        (0, k_pad - k_raw)))
    # Split padded row index hp = q*stride + p into (phase p, offset q): tap r
    # touches phase r % stride at contiguous offsets r//stride + [0, Ho).
    x_ph = x_p.reshape(n_img_pad, h_phase, stride, k_pad).transpose(2, 0, 1, 3)
    x_ph = x_ph.astype(in_dtype)               # (stride, Npad, Hphase, Kpad)

    # Per-tap block-Toeplitz weights over W (dense over Cin), built in f32
    # and cast once at the end (avoids double rounding on a bf16 path):
    #   w_big[r, (wp,ci), (wo,co)] = W[co,ci,r,wp - wo*stride] if in-window else 0
    w_hwio = jnp.transpose(weight_oihw, (2, 3, 1, 0)).astype(jnp.float32)
    sel = (jnp.arange(w_pad)[None, None, :]
           == jnp.arange(w_out)[:, None, None] * stride
           + jnp.arange(kw)[None, :, None]).astype(jnp.float32)  # (Wo,KW,Wpad)
    w_big = jnp.einsum("wjp,rjco->rpcwo", sel, w_hwio)  # (KH,Wpad,Cin,Wo,Cout)
    w_big = w_big.reshape(kh, k_raw, n_cols)
    w_big = jnp.pad(w_big, ((0, 0), (0, k_pad - k_raw),
                            (0, n_cols_pad - n_cols))).astype(in_dtype)

    b_row = jnp.pad(jnp.tile(bias.astype(jnp.float32), (w_out,)),
                    (0, n_cols_pad - n_cols)).reshape(1, n_cols_pad)

    # ---------------- VMEM / cost bookkeeping -------------------------------
    w_invariant = (num_n_tiles == 1)           # weight & bias never change
    vmem_needed = (
        2 * stride * imgs_per_blk * h_phase * k_pad * itm         # x (2 bufs)
        + (1 if w_invariant else 2) * kh * k_pad * block_n * itm  # weights
        + (1 if w_invariant else 2) * block_n * 4                 # bias
        + 2 * imgs_per_blk * h_out * block_n * 4                  # out tile
        + imgs_per_blk * h_out * (block_n + k_pad) * 4            # acc + lhs tmp
    )
    cost = pl.CostEstimate(
        flops=2 * kh * (n_img_pad * h_out) * k_pad * n_cols_pad,  # MXU-executed
        transcendentals=0,
        bytes_accessed=(x_ph.size * itm + w_big.size * itm + b_row.size * 4
                        + n_img_pad * h_out * n_cols_pad
                        * jnp.dtype(x_nchw.dtype).itemsize),
    )

    w_pipe = dict(pipeline_mode=pl.Buffered(1)) if w_invariant else {}

    # ---------------- gridded, pipelined lane-dense GEMM --------------------
    out3 = pl.pallas_call(
        _conv_row_gemm_kernel,
        out_shape=jax.ShapeDtypeStruct((n_img_pad, h_out, n_cols_pad),
                                       x_nchw.dtype),
        grid=(num_m_tiles, num_n_tiles),
        in_specs=[
            pl.BlockSpec((stride, imgs_per_blk, h_phase, k_pad),
                         lambda i, j: (0, i, 0, 0)),
            pl.BlockSpec((kh, k_pad, block_n), lambda i, j: (0, 0, j),
                         **w_pipe),
            pl.BlockSpec((1, block_n), lambda i, j: (0, j), **w_pipe),
        ],
        out_specs=pl.BlockSpec((imgs_per_blk, h_out, block_n),
                               lambda i, j: (i, 0, j)),
        compiler_params=pltpu.CompilerParams(
            dimension_semantics=("parallel", "parallel"),
            vmem_limit_bytes=_vmem_limit_bytes(vmem_needed),
        ),
        cost_estimate=cost,
    )(x_ph, w_big, b_row)

    # Lane-dense (Npad, Ho, Wo*Cout) == padded flat NHWC; strip padding and
    # reshuffle to NCHW in the wrapper (never write NCHW from the kernel).
    out_nhwc = out3[:n, :, :n_cols].reshape(n, h_out, w_out, c_out)
    return jnp.transpose(out_nhwc, (0, 3, 1, 2)).astype(x_nchw.dtype)


def _reference(x_nchw, weight_oihw, bias, stride, padding):
    out = jax.lax.conv_general_dilated(
        x_nchw, weight_oihw,
        window_strides=(stride, stride),
        padding=[(padding, padding), (padding, padding)],
        dimension_numbers=("NCHW", "OIHW", "NCHW"))
    out = out + bias.reshape(1, -1, 1, 1)
    return jnp.maximum(out, 0.0)


if __name__ == "__main__":
    # Module hyperparameters (deterministic, in-script).
    kernel_size = 3
    in_channels = 4
    out_channels = 8
    stride_val = 1
    padding_val = 1

    # Small NCHW input consistent with the module's forward.
    N, H, W = 2, 16, 16
    key = jax.random.PRNGKey(0)
    kx, kw_, kb = jax.random.split(key, 3)

    x = jax.random.normal(kx, (N, in_channels, H, W), dtype=jnp.float32)

    # PyTorch-style default init: U(-1/sqrt(fan_in), 1/sqrt(fan_in)).
    fan_in = in_channels * kernel_size * kernel_size
    bound = 1.0 / (fan_in ** 0.5)
    weight = jax.random.uniform(
        kw_, (out_channels, in_channels, kernel_size, kernel_size),
        minval=-bound, maxval=bound, dtype=jnp.float32)
    bias = jax.random.uniform(
        kb, (out_channels,), minval=-bound, maxval=bound, dtype=jnp.float32)

    conv_fn = jax.jit(conv_relu, static_argnums=(3, 4))

    out = jax.block_until_ready(conv_fn(x, weight, bias, stride_val, padding_val))
    ref = _reference(x, weight, bias, stride_val, padding_val)
    assert out.shape == ref.shape, (out.shape, ref.shape)
    assert jnp.allclose(out, ref, atol=1e-4, rtol=1e-4), "mismatch vs reference conv"

    # Secondary check: stride 2, no padding (exercises phase-split + Toeplitz).
    out_s2 = jax.block_until_ready(conv_fn(x, weight, bias, 2, 0))
    ref_s2 = _reference(x, weight, bias, 2, 0)
    assert out_s2.shape == ref_s2.shape, (out_s2.shape, ref_s2.shape)
    assert jnp.allclose(out_s2, ref_s2, atol=1e-4, rtol=1e-4), "mismatch (stride 2)"

    print("KERNEL_OK")
</pallas_src>

<mosaic_0001>
module attributes {stable_mosaic.version = 11 : i64} {
  func.func @_conv_row_gemm_kernel(%arg0: i32, %arg1: i32, %arg2: memref<1x1x18x128xf32, #tpu.memory_space<vmem>>, %arg3: memref<3x128x128xf32, #tpu.memory_space<vmem>>, %arg4: memref<1x128xf32, #tpu.memory_space<vmem>>, %arg5: memref<1x16x128xf32, #tpu.memory_space<vmem>>) attributes {dimension_semantics = [#tpu.dimension_semantics<parallel>, #tpu.dimension_semantics<parallel>], iteration_bounds = array<i64: 2, 1>, scalar_prefetch = 0 : i64, scratch_operands = 0 : i64, tpu.core_type = #tpu.core_type<tc>, window_params = [{transform_indices = @transform_0, window_bounds = array<i64: 1, 1, 18, 128>}, {pipeline_mode = #tpu.pipeline_mode<synchronous>, transform_indices = @transform_1, window_bounds = array<i64: 3, 128, 128>}, {pipeline_mode = #tpu.pipeline_mode<synchronous>, transform_indices = @transform_2, window_bounds = array<i64: 1, 128>}, {transform_indices = @transform_3, window_bounds = array<i64: 1, 16, 128>}]} {
    %cst = arith.constant 0.000000e+00 : f32
    %0 = vector.broadcast %cst : f32 to vector<16x128xf32>
    %c0 = arith.constant 0 : index
    %c0_0 = arith.constant 0 : index
    %c0_1 = arith.constant 0 : index
    %c0_2 = arith.constant 0 : index
    %1 = vector.load %arg2[%c0, %c0_0, %c0_1, %c0_2] : memref<1x1x18x128xf32, #tpu.memory_space<vmem>>, vector<1x1x16x128xf32>
    %2 = vector.shape_cast %1 : vector<1x1x16x128xf32> to vector<1x16x128xf32>
    %3 = vector.shape_cast %2 : vector<1x16x128xf32> to vector<16x128xf32>
    %c0_3 = arith.constant 0 : index
    %c0_4 = arith.constant 0 : index
    %c0_5 = arith.constant 0 : index
    %4 = vector.load %arg3[%c0_3, %c0_4, %c0_5] : memref<3x128x128xf32, #tpu.memory_space<vmem>>, vector<1x128x128xf32>
    %5 = vector.shape_cast %4 : vector<1x128x128xf32> to vector<128x128xf32>
    %cst_6 = arith.constant dense<0.000000e+00> : vector<16x128xf32>
    %6 = tpu.matmul %3, %5, %cst_6 {dimension_numbers = #tpu.dot_dimension_numbers<[1], [0], [0], [1], [0, 0, 1, 1], [], []>} : vector<16x128xf32>, vector<128x128xf32>, vector<16x128xf32> -> vector<16x128xf32>
    %7 = arith.addf %0, %6 : vector<16x128xf32>
    %c0_7 = arith.constant 0 : index
    %c0_8 = arith.constant 0 : index
    %c1 = arith.constant 1 : index
    %c0_9 = arith.constant 0 : index
    %8 = vector.load %arg2[%c0_7, %c0_8, %c1, %c0_9] : memref<1x1x18x128xf32, #tpu.memory_space<vmem>>, vector<1x1x16x128xf32>
    %9 = vector.shape_cast %8 : vector<1x1x16x128xf32> to vector<1x16x128xf32>
    %10 = vector.shape_cast %9 : vector<1x16x128xf32> to vector<16x128xf32>
    %c1_10 = arith.constant 1 : index
    %c0_11 = arith.constant 0 : index
    %c0_12 = arith.constant 0 : index
    %11 = vector.load %arg3[%c1_10, %c0_11, %c0_12] : memref<3x128x128xf32, #tpu.memory_space<vmem>>, vector<1x128x128xf32>
    %12 = vector.shape_cast %11 : vector<1x128x128xf32> to vector<128x128xf32>
    %cst_13 = arith.constant dense<0.000000e+00> : vector<16x128xf32>
    %13 = tpu.matmul %10, %12, %cst_13 {dimension_numbers = #tpu.dot_dimension_numbers<[1], [0], [0], [1], [0, 0, 1, 1], [], []>} : vector<16x128xf32>, vector<128x128xf32>, vector<16x128xf32> -> vector<16x128xf32>
    %14 = arith.addf %7, %13 : vector<16x128xf32>
    %c0_14 = arith.constant 0 : index
    %c0_15 = arith.constant 0 : index
    %c2 = arith.constant 2 : index
    %c0_16 = arith.constant 0 : index
    %15 = vector.load %arg2[%c0_14, %c0_15, %c2, %c0_16] : memref<1x1x18x128xf32, #tpu.memory_space<vmem>>, vector<1x1x16x128xf32>
    %16 = vector.shape_cast %15 : vector<1x1x16x128xf32> to vector<1x16x128xf32>
    %17 = vector.shape_cast %16 : vector<1x16x128xf32> to vector<16x128xf32>
    %c2_17 = arith.constant 2 : index
    %c0_18 = arith.constant 0 : index
    %c0_19 = arith.constant 0 : index
    %18 = vector.load %arg3[%c2_17, %c0_18, %c0_19] : memref<3x128x128xf32, #tpu.memory_space<vmem>>, vector<1x128x128xf32>
    %19 = vector.shape_cast %18 : vector<1x128x128xf32> to vector<128x128xf32>
    %cst_20 = arith.constant dense<0.000000e+00> : vector<16x128xf32>
    %20 = tpu.matmul %17, %19, %cst_20 {dimension_numbers = #tpu.dot_dimension_numbers<[1], [0], [0], [1], [0, 0, 1, 1], [], []>} : vector<16x128xf32>, vector<128x128xf32>, vector<16x128xf32> -> vector<16x128xf32>
    %21 = arith.addf %14, %20 : vector<16x128xf32>
    %c0_21 = arith.constant 0 : index
    %c0_22 = arith.constant 0 : index
    %22 = vector.load %arg4[%c0_21, %c0_22] : memref<1x128xf32, #tpu.memory_space<vmem>>, vector<1x128xf32>
    %23 = vector.broadcast %22 : vector<1x128xf32> to vector<16x128xf32>
    %24 = arith.addf %21, %23 : vector<16x128xf32>
    %cst_23 = arith.constant 0.000000e+00 : f32
    %25 = vector.broadcast %cst_23 : f32 to vector<16x128xf32>
    %26 = arith.maximumf %24, %25 : vector<16x128xf32>
    %27 = vector.shape_cast %26 : vector<16x128xf32> to vector<1x16x128xf32>
    %c0_24 = arith.constant 0 : index
    %c0_25 = arith.constant 0 : index
    %c0_26 = arith.constant 0 : index
    %28 = vector.load %arg5[%c0_24, %c0_25, %c0_26] : memref<1x16x128xf32, #tpu.memory_space<vmem>>, vector<1x16x128xf32>
    tpu.vector_store %arg5[%c0_24, %c0_25, %c0_26], %27 {strides = array<i32>} : memref<1x16x128xf32, #tpu.memory_space<vmem>>, vector<1x16x128xf32>,
    return
  }
  func.func @transform_0(%arg0: i32, %arg1: i32) -> (i32, i32, i32, i32) {
    %c0_i32 = arith.constant 0 : i32
    %c0_i32_0 = arith.constant 0 : i32
    %c0_i32_1 = arith.constant 0 : i32
    %c0_i32_2 = arith.constant 0 : i32
    return %c0_i32, %arg0, %c0_i32_0, %c0_i32_1 : i32, i32, i32, i32
  }
  func.func @transform_1(%arg0: i32, %arg1: i32) -> (i32, i32, i32) {
    %c0_i32 = arith.constant 0 : i32
    %c0_i32_0 = arith.constant 0 : i32
    %c0_i32_1 = arith.constant 0 : i32
    return %c0_i32, %c0_i32_0, %arg1 : i32, i32, i32
  }
  func.func @transform_2(%arg0: i32, %arg1: i32) -> (i32, i32) {
    %c0_i32 = arith.constant 0 : i32
    %c0_i32_0 = arith.constant 0 : i32
    return %c0_i32, %arg1 : i32, i32
  }
  func.func @transform_3(%arg0: i32, %arg1: i32) -> (i32, i32, i32) {
    %c0_i32 = arith.constant 0 : i32
    %c0_i32_0 = arith.constant 0 : i32
    return %arg0, %c0_i32, %arg1 : i32, i32, i32
  }
}

</mosaic_0001>

<llo_original>
// kernel: tile.8
$region0: #{tile.8}
  #allocation0 [shape = 's32[1]{0}', space=sflag, size = 0x4, scoped, tag = 'scoped memory for tile.8']
  %s0 = inlined_call_operand.vmem [shape: f32[8], index: 0, kind: input, shape index: {}]
  %s1 = inlined_call_operand.vmem [shape: f32[16,8], index: 1, kind: output, shape index: {}]
  // Predicated region
  $region2: #{tile.8} parent=0 // pred_check
    _
  $region3: #{tile.8} parent=0 // pred_check_branch
    %3 = sbr.rel (0) target = $region5
  $region4: #{tile.8} parent=0 // pred_region
    _
  $region5: #{tile.8} parent=0 // pred_fallthru
    _
  %v4 = vld [vmem:[%s0] ss:$0 sm:$0xff]
  %5 = vst [vmem:[%s1] sm:$0xff] %v4
  %s6 = scalar_lea.vmem %s1, 8
  %7 = vst [vmem:[%s6] sm:$0xff] %v4

// kernel: conv_relu.1
$region0: #{conv_relu.1}
  #allocation0 [shape = 'u32[]', space=smem, size = 0x4, offset = 0x4, fixed_abs, tag = 'smem constant byte address 0x4 - core index']
  #allocation1 [shape = 'u32[144,128]{1,0:T(1,128)}', space=vmem, size = 0x12000, scoped, tag = 'internal scratch']
  %s0 = inlined_call_operand.vmem [shape: f32[1,2,18,128], index: 0, kind: input, shape index: {}]
  %s1 = inlined_call_operand.vmem [shape: f32[3,128,128], index: 1, kind: input, shape index: {}]
  %s2 = inlined_call_operand.vmem [shape: f32[1,128], index: 2, kind: input, shape index: {}]
  %s3 = inlined_call_operand.vmem [shape: f32[2,16,128], index: 3, kind: output, shape index: {}]
  %s4 = sld [smem:[#allocation0]]
  $region45: #{conv_relu.1} parent=0
    _
  %s6 = ssub.s32 1, %s4
  %s7 = scalar_select 0, %s6, %s4
  loop: start=0, step=1, limit=4
  $region2: #{conv_relu.1} parent=0 // loop_pre_header
    _
  $region3: #{conv_relu.1} parent=0 // loop_header
    %s9 = sphi 0, %s13
    %p10 = scmp.ge.s32.totalorder %s9, 4
    %s16 = sphi 0, %s28
    %s17 = sphi 0, %s24
    %s18 = sphi 0, %s16
    %s19 = sphi 0, %s17
    %s20 = sphi 0, %s18
    %s21 = sphi 0, %s19
    %s31 = sphi 0, %s33
    %s34 = sphi 0, %s31
    %s35 = sphi 0, %s34
    %s51 = sphi 0, %s35
    %s57 = sphi 0, %s59
    %s60 = sphi 0, %s57
    %s61 = sphi 0, %s60
    %s77 = sphi 0, %s61
    %s83 = sphi 0, %s85
    %s86 = sphi 0, %s83
    %s87 = sphi 0, %s86
    %s103 = sphi 0, %s87
    %s111 = sphi 0, %s113
    %s114 = sphi 0, %s111
    %s115 = sphi 0, %s114
    %s131 = sphi 0, %s115
  $region4: #{conv_relu.1} parent=0 // loop_header_branch
    %12 = sbr.rel (%p10) target = $region8
  $region5: #{conv_relu.1} parent=0 // loop_body
    %s14 = ssub.s32 %s9, 1
    %s15 = ssub.s32 %s9, 2
    %s22 = sadd.s32 1, %s17
    %p23 = scmp.ge.s32.totalorder %s22, 1
    %s24 = scalar_select %p23, 0, %s22
    %s25 = sadd.s32 1, %s16
    %s26 = scalar_select %p23, %s25, %s16
    %p27 = scmp.ge.s32.totalorder %s26, 2
    %s28 = scalar_select %p27, 0, %s26
    %s29 = ssub.s32 %s16, %s28
    %p30 = scmp.eq.s32.totalorder %s29, 0
    %s32 = sadd.s32 %s31, 1
    %s33 = scalar_select %p30, %s31, %s32
    %p36 = pneg %p30
    %p37 = scmp.eq.s32.totalorder %s9, 1
    %p38 = por %p36, %p37
    %p39 = scmp.ne.s32.totalorder %s31, %s34
    %p40 = scmp.eq.s32.totalorder %s9, 0
    %p41 = por %p39, %p40
    %p42 = scmp.ne.s32.totalorder %s31, %s34
    %p43 = scmp.eq.s32.totalorder %s14, 1
    %p44 = por %p42, %p43
    %p45 = scmp.ne.s32.totalorder %s34, %s35
    %p46 = scmp.eq.s32.totalorder %s14, 0
    %p47 = por %p45, %p46
    %p48 = scmp.ne.s32.totalorder %s34, %s35
    %p49 = scmp.eq.s32.totalorder %s15, 1
    %p50 = por %p48, %p49
    %p52 = scmp.ne.s32.totalorder %s35, %s51
    %p53 = scmp.eq.s32.totalorder %s15, 0
    %p54 = por %p52, %p53
    %s55 = ssub.s32 %s17, %s24
    %p56 = scmp.eq.s32.totalorder %s55, 0
    %s58 = sadd.s32 %s57, 1
    %s59 = scalar_select %p56, %s57, %s58
    %p62 = pneg %p56
    %p63 = scmp.eq.s32.totalorder %s9, 1
    %p64 = por %p62, %p63
    %p65 = scmp.ne.s32.totalorder %s57, %s60
    %p66 = scmp.eq.s32.totalorder %s9, 0
    %p67 = por %p65, %p66
    %p68 = scmp.ne.s32.totalorder %s57, %s60
    %p69 = scmp.eq.s32.totalorder %s14, 1
    %p70 = por %p68, %p69
    %p71 = scmp.ne.s32.totalorder %s60, %s61
    %p72 = scmp.eq.s32.totalorder %s14, 0
    %p73 = por %p71, %p72
    %p74 = scmp.ne.s32.totalorder %s60, %s61
    %p75 = scmp.eq.s32.totalorder %s15, 1
    %p76 = por %p74, %p75
    %p78 = scmp.ne.s32.totalorder %s61, %s77
    %p79 = scmp.eq.s32.totalorder %s15, 0
    %p80 = por %p78, %p79
    %s81 = ssub.s32 %s17, %s24
    %p82 = scmp.eq.s32.totalorder %s81, 0
    %s84 = sadd.s32 %s83, 1
    %s85 = scalar_select %p82, %s83, %s84
    %p88 = pneg %p82
    %p89 = scmp.eq.s32.totalorder %s9, 1
    %p90 = por %p88, %p89
    %p91 = scmp.ne.s32.totalorder %s83, %s86
    %p92 = scmp.eq.s32.totalorder %s9, 0
    %p93 = por %p91, %p92
    %p94 = scmp.ne.s32.totalorder %s83, %s86
    %p95 = scmp.eq.s32.totalorder %s14, 1
    %p96 = por %p94, %p95
    %p97 = scmp.ne.s32.totalorder %s86, %s87
    %p98 = scmp.eq.s32.totalorder %s14, 0
    %p99 = por %p97, %p98
    %p100 = scmp.ne.s32.totalorder %s86, %s87
    %p101 = scmp.eq.s32.totalorder %s15, 1
    %p102 = por %p100, %p101
    %p104 = scmp.ne.s32.totalorder %s87, %s103
    %p105 = scmp.eq.s32.totalorder %s15, 0
    %p106 = por %p104, %p105
    %s107 = ssub.s32 %s16, %s28
    %s108 = ssub.s32 %s17, %s24
    %s109 = sor.u32 %s107, %s108
    %p110 = scmp.eq.s32.totalorder %s109, 0
    %s112 = sadd.s32 %s111, 1
    %s113 = scalar_select %p110, %s111, %s112
    %p116 = pneg %p110
    %p117 = scmp.eq.s32.totalorder %s9, 1
    %p118 = por %p116, %p117
    %p119 = scmp.ne.s32.totalorder %s111, %s114
    %p120 = scmp.eq.s32.totalorder %s9, 0
    %p121 = por %p119, %p120
    %p122 = scmp.ne.s32.totalorder %s111, %s114
    %p123 = scmp.eq.s32.totalorder %s14, 1
    %p124 = por %p122, %p123
    %p125 = scmp.ne.s32.totalorder %s114, %s115
    %p126 = scmp.eq.s32.totalorder %s14, 0
    %p127 = por %p125, %p126
    %p128 = scmp.ne.s32.totalorder %s114, %s115
    %p129 = scmp.eq.s32.totalorder %s15, 1
    %p130 = por %p128, %p129
    %p132 = scmp.ne.s32.totalorder %s115, %s131
    %p133 = scmp.eq.s32.totalorder %s15, 0
    %p134 = por %p132, %p133
    %p135 = scmp.le.s32.totalorder 1, %s9
    %p136 = scmp.lt.s32.totalorder %s9, 3
    %p137 = pnand %p135, %p136
    %p138 = pneg %p137
    // Predicated region
    $region9: #{conv_relu.1} parent=5 // pred_check
      _
    $region10: #{conv_relu.1} parent=5 // pred_check_branch
      %140 = sbr.rel (%p137) target = $region12
    $region11: #{conv_relu.1} parent=5 // pred_region
      %s141 = ssub.s32 %s9, 1
      // Predicated region
      $region13: #{conv_relu.1} parent=11 // pred_check
        %p142 = pneg %p73
      $region14: #{conv_relu.1} parent=11 // pred_check_branch
        %144 = sbr.rel (%p142) target = $region16
      $region15: #{conv_relu.1} parent=11 // pred_region
        %p145 = scmp.lt.s32.totalorder %s19, 0
        %s146 = scalar_select %p145, %s19, 0
        %s147 = smul.addr %s146, 8
        %s148 = scalar_lea.vmem %s1, %s147
      $region16: #{conv_relu.1} parent=11 // pred_fallthru
        _
      // Predicated region
      $region17: #{conv_relu.1} parent=11 // pred_check
        %p149 = pneg %p99
      $region18: #{conv_relu.1} parent=11 // pred_check_branch
        %151 = sbr.rel (%p149) target = $region20
      $region19: #{conv_relu.1} parent=11 // pred_region
        %p152 = scmp.lt.s32.totalorder %s19, 0
        %s153 = scalar_select %p152, %s19, 0
        %s154 = scalar_lea.vmem %s2, %s153
      $region20: #{conv_relu.1} parent=11 // pred_fallthru
        _
    $region12: #{conv_relu.1} parent=5 // pred_fallthru
      _
    %p155 = scmp.lt.s32.totalorder %s9, 2
    // Predicated region
    $region21: #{conv_relu.1} parent=5 // pred_check
      %p156 = pneg %p155
    $region22: #{conv_relu.1} parent=5 // pred_check_branch
      %158 = sbr.rel (%p156) target = $region24
    $region23: #{conv_relu.1} parent=5 // pred_region
      // Predicated region
      $region25: #{conv_relu.1} parent=23 // pred_check
        %p159 = pneg %p41
      $region26: #{conv_relu.1} parent=23 // pred_check_branch
        %161 = sbr.rel (%p159) target = $region28
      $region27: #{conv_relu.1} parent=23 // pred_region
        %p162 = scmp.lt.s32.totalorder %s16, 1
        %s163 = scalar_select %p162, %s16, 1
        %s164 = smul.addr %s163, 3
        %s165 = smul.addr %s164, 8
        %s166 = scalar_lea.vmem %s0, %s165
      $region28: #{conv_relu.1} parent=23 // pred_fallthru
        _
    $region24: #{conv_relu.1} parent=5 // pred_fallthru
      _
    %p167 = scmp.le.s32.totalorder 1, %s9
    %p168 = scmp.lt.s32.totalorder %s9, 3
    %p169 = pnand %p167, %p168
    %p170 = pneg %p169
    // Predicated region
    $region29: #{conv_relu.1} parent=5 // pred_check
      _
    $region30: #{conv_relu.1} parent=5 // pred_check_branch
      %172 = sbr.rel (%p169) target = $region32
    $region31: #{conv_relu.1} parent=5 // pred_region
      %s173 = ssub.s32 %s9, 1
      %p174 = scmp.lt.s32.totalorder %s18, 1
      %s175 = scalar_select %p174, %s18, 1
      %s176 = smul.addr %s175, 3
      %s177 = smul.addr %s176, 8
      %s178 = scalar_lea.vmem %s0, %s177
      %p179 = pneg %p47
      %p180 = pneg %p44
      %p181 = scmp.lt.s32.totalorder %s19, 0
      %s182 = scalar_select %p181, %s19, 0
      %s183 = smul.addr %s182, 8
      %s184 = scalar_lea.vmem %s1, %s183
      %p185 = pneg %p73
      %p186 = pneg %p70
      %p187 = scmp.lt.s32.totalorder %s19, 0
      %s188 = scalar_select %p187, %s19, 0
      %s189 = scalar_lea.vmem %s2, %s188
      %p190 = pneg %p99
      %p191 = pneg %p96
      %p192 = pneg %p127
      %p193 = pneg %p124
      %p194 = scmp.lt.s32.totalorder %s18, 1
      %s195 = scalar_select %p194, %s18, 1
      %p196 = scmp.lt.s32.totalorder %s19, 0
      %s197 = scalar_select %p196, %s19, 0
      %s198 = smul.addr %s195, 2
      %s199 = sadd.s32 %s197, %s198
      %s200 = smul.addr %s199, 8
      %s201 = scalar_lea.vmem %s3, %s200
      %p202 = scmp.lt.s32.totalorder %s18, 1
      %s203 = scalar_select %p202, %s18, 1
      %s204 = smul.addr %s203, 3
      %s205 = smul.addr %s204, 8
      %s206 = scalar_lea.vmem %s0, %s205
      %p207 = scmp.lt.s32.totalorder %s19, 0
      %s208 = scalar_select %p207, %s19, 0
      %s209 = smul.addr %s208, 8
      %s210 = scalar_lea.vmem %s1, %s209
      %p211 = scmp.lt.s32.totalorder %s19, 0
      %s212 = scalar_select %p211, %s19, 0
      %s213 = scalar_lea.vmem %s2, %s212
      %p214 = scmp.lt.s32.totalorder %s18, 1
      %s215 = scalar_select %p214, %s18, 1
      %p216 = scmp.lt.s32.totalorder %s19, 0
      %s217 = scalar_select %p216, %s19, 0
      %s218 = smul.addr %s215, 2
      %s219 = sadd.s32 %s217, %s218
      %s220 = smul.addr %s219, 8
      %s221 = scalar_lea.vmem %s3, %s220
      %v222 = vld [vmem:[%s206] sm:$0xff]
      %v223 = vld [vmem:[%s206 + $0x8] sm:$0xff]
      %v224 = vld [vmem:[%s210] sm:$0xff]
      %v225 = vld [vmem:[%s210 + $0x8] sm:$0xff]
      %v226 = vld [vmem:[%s210 + $0x10] sm:$0xff]
      %v227 = vld [vmem:[%s210 + $0x18] sm:$0xff]
      %v228 = vld [vmem:[%s210 + $0x20] sm:$0xff]
      %v229 = vld [vmem:[%s210 + $0x28] sm:$0xff]
      %v230 = vld [vmem:[%s210 + $0x30] sm:$0xff]
      %v231 = vld [vmem:[%s210 + $0x38] sm:$0xff]
      %v232 = vld [vmem:[%s210 + $0x40] sm:$0xff]
      %v233 = vld [vmem:[%s210 + $0x48] sm:$0xff]
      %v234 = vld [vmem:[%s210 + $0x50] sm:$0xff]
      %v235 = vld [vmem:[%s210 + $0x58] sm:$0xff]
      %v236 = vld [vmem:[%s210 + $0x60] sm:$0xff]
      %v237 = vld [vmem:[%s210 + $0x68] sm:$0xff]
      %v238 = vld [vmem:[%s210 + $0x70] sm:$0xff]
      %v239 = vld [vmem:[%s210 + $0x78] sm:$0xff]
      %v240 = vld [vmem:[%s206 + $0x1] sm:$0xff]
      %v241 = vld [vmem:[%s206 + $0x9] sm:$0xff]
      %s242 = scalar_lea.vmem %s210, 128
      %v243 = vld [vmem:[%s242] sm:$0xff]
      %v244 = vld [vmem:[%s242 + $0x8] sm:$0xff]
      %v245 = vld [vmem:[%s242 + $0x10] sm:$0xff]
      %v246 = vld [vmem:[%s242 + $0x18] sm:$0xff]
      %v247 = vld [vmem:[%s242 + $0x20] sm:$0xff]
      %v248 = vld [vmem:[%s242 + $0x28] sm:$0xff]
      %v249 = vld [vmem:[%s242 + $0x30] sm:$0xff]
      %v250 = vld [vmem:[%s242 + $0x38] sm:$0xff]
      %v251 = vld [vmem:[%s242 + $0x40] sm:$0xff]
      %v252 = vld [vmem:[%s242 + $0x48] sm:$0xff]
      %v253 = vld [vmem:[%s242 + $0x50] sm:$0xff]
      %v254 = vld [vmem:[%s242 + $0x58] sm:$0xff]
      %v255 = vld [vmem:[%s242 + $0x60] sm:$0xff]
      %v256 = vld [vmem:[%s242 + $0x68] sm:$0xff]
      %v257 = vld [vmem:[%s242 + $0x70] sm:$0xff]
      %v258 = vld [vmem:[%s242 + $0x78] sm:$0xff]
      %259 = vmatprep.subr.mxu0 0.0
      %260 = vmatpush1.msra.mxu0 %v243
      %261 = vmatprep.subr.mxu0 0.0
      %262 = vmatpush1.msra.mxu0 %v244
      %263 = vmatprep.subr.mxu0 0.0
      %264 = vmatpush1.msra.mxu0 %v245
      %265 = vmatprep.subr.mxu0 0.0
      %266 = vmatpush1.msra.mxu0 %v246
      %267 = vmatprep.subr.mxu0 0.0
      %268 = vmatpush1.msra.mxu0 %v247
      %269 = vmatprep.subr.mxu0 0.0
      %270 = vmatpush1.msra.mxu0 %v248
      %271 = vmatprep.subr.mxu0 0.0
      %272 = vmatpush1.msra.mxu0 %v249
      %273 = vmatprep.subr.mxu0 0.0
      %274 = vmatpush1.msra.mxu0 %v250
      %275 = vmatprep.subr.mxu0 0.0
      %276 = vmatpush1.msra.mxu0 %v251
      %277 = vmatprep.subr.mxu0 0.0
      %278 = vmatpush1.msra.mxu0 %v252
      %279 = vmatprep.subr.mxu0 0.0
      %280 = vmatpush1.msra.mxu0 %v253
      %281 = vmatprep.subr.mxu0 0.0
      %282 = vmatpush1.msra.mxu0 %v254
      %283 = vmatprep.subr.mxu0 0.0
      %284 = vmatpush1.msra.mxu0 %v255
      %285 = vmatprep.subr.mxu0 0.0
      %286 = vmatpush1.msra.mxu0 %v256
      %287 = vmatprep.subr.mxu0 0.0
      %288 = vmatpush1.msra.mxu0 %v257
      %289 = vmatprep.subr.mxu0 0.0
      %290 = vmatpush1.msra.mxu0 %v258
      %291 = vmatprep.subr.mxu0 0.0
      %292 = vmatpush1.msra.mxu0 0.0
      %293 = vmatprep.subr.mxu0 0.0
      %294 = vmatpush1.msra.mxu0 0.0
      %295 = vmatprep.subr.mxu0 0.0
      %296 = vmatpush1.msra.mxu0 0.0
      %297 = vmatprep.subr.mxu0 0.0
      %298 = vmatpush1.msra.mxu0 0.0
      %299 = vmatprep.subr.mxu0 0.0
      %300 = vmatpush1.msra.mxu0 0.0
      %301 = vmatprep.subr.mxu0 0.0
      %302 = vmatpush1.msra.mxu0 0.0
      %303 = vmatprep.subr.mxu0 0.0
      %304 = vmatpush1.msra.mxu0 0.0
      %305 = vmatprep.subr.mxu0 0.0
      %306 = vmatpush1.msra.mxu0 0.0
      %307 = vmatprep.subr.mxu0 0.0
      %308 = vmatpush1.msra.mxu0 0.0
      %309 = vmatprep.subr.mxu0 0.0
      %310 = vmatpush1.msra.mxu0 0.0
      %311 = vmatprep.subr.mxu0 0.0
      %312 = vmatpush1.msra.mxu0 0.0
      %313 = vmatprep.subr.mxu0 0.0
      %314 = vmatpush1.msra.mxu0 0.0
      %315 = vmatprep.subr.mxu0 0.0
      %316 = vmatpush1.msra.mxu0 0.0
      %317 = vmatprep.subr.mxu0 0.0
      %318 = vmatpush1.msra.mxu0 0.0
      %319 = vmatprep.subr.mxu0 0.0
      %320 = vmatpush1.msra.mxu0 0.0
      %321 = vmatprep.subr.mxu0 0.0
      %322 = vmatpush1.msra.mxu0 0.0
      %323 = vmatprep.mubr.f32.mxu0 0.0
      %324 = vmatmul.mubr.f32.gmra.mrb[0].mxu0 %v240
      %v325 = vpop.f32.mrb[0].mxu0
      %v326 = vadd.f32 0.0, %v325
      %v327 = vpop.f32.mrb[0].mxu0
      %328 = vmatprep.mubr.f32.mxu0 0.0
      %329 = vmatmul.mubr.f32.gmra.mrb[0].mxu0 %v241
      %v330 = vpop.f32.mrb[0].mxu0
      %v331 = vadd.f32 0.0, %v330
      %v332 = vpop.f32.mrb[0].mxu0
      %333 = vdwg.mxu0
      %334 = vmatprep.subr.mxu0 0.0
      %335 = vmatpush1.msra.mxu0 %v224
      %336 = vmatprep.subr.mxu0 0.0
      %337 = vmatpush1.msra.mxu0 %v225
      %338 = vmatprep.subr.mxu0 0.0
      %339 = vmatpush1.msra.mxu0 %v226
      %340 = vmatprep.subr.mxu0 0.0
      %341 = vmatpush1.msra.mxu0 %v227
      %342 = vmatprep.subr.mxu0 0.0
      %343 = vmatpush1.msra.mxu0 %v228
      %344 = vmatprep.subr.mxu0 0.0
      %345 = vmatpush1.msra.mxu0 %v229
      %346 = vmatprep.subr.mxu0 0.0
      %347 = vmatpush1.msra.mxu0 %v230
      %348 = vmatprep.subr.mxu0 0.0
      %349 = vmatpush1.msra.mxu0 %v231
      %350 = vmatprep.subr.mxu0 0.0
      %351 = vmatpush1.msra.mxu0 %v232
      %352 = vmatprep.subr.mxu0 0.0
      %353 = vmatpush1.msra.mxu0 %v233
      %354 = vmatprep.subr.mxu0 0.0
      %355 = vmatpush1.msra.mxu0 %v234
      %356 = vmatprep.subr.mxu0 0.0
      %357 = vmatpush1.msra.mxu0 %v235
      %358 = vmatprep.subr.mxu0 0.0
      %359 = vmatpush1.msra.mxu0 %v236
      %360 = vmatprep.subr.mxu0 0.0
      %361 = vmatpush1.msra.mxu0 %v237
      %362 = vmatprep.subr.mxu0 0.0
      %363 = vmatpush1.msra.mxu0 %v238
      %364 = vmatprep.subr.mxu0 0.0
      %365 = vmatpush1.msra.mxu0 %v239
      %366 = vmatprep.subr.mxu0 0.0
      %367 = vmatpush1.msra.mxu0 0.0
      %368 = vmatprep.subr.mxu0 0.0
      %369 = vmatpush1.msra.mxu0 0.0
      %370 = vmatprep.subr.mxu0 0.0
      %371 = vmatpush1.msra.mxu0 0.0
      %372 = vmatprep.subr.mxu0 0.0
      %373 = vmatpush1.msra.mxu0 0.0
      %374 = vmatprep.subr.mxu0 0.0
      %375 = vmatpush1.msra.mxu0 0.0
      %376 = vmatprep.subr.mxu0 0.0
      %377 = vmatpush1.msra.mxu0 0.0
      %378 = vmatprep.subr.mxu0 0.0
      %379 = vmatpush1.msra.mxu0 0.0
      %380 = vmatprep.subr.mxu0 0.0
      %381 = vmatpush1.msra.mxu0 0.0
      %382 = vmatprep.subr.mxu0 0.0
      %383 = vmatpush1.msra.mxu0 0.0
      %384 = vmatprep.subr.mxu0 0.0
      %385 = vmatpush1.msra.mxu0 0.0
      %386 = vmatprep.subr.mxu0 0.0
      %387 = vmatpush1.msra.mxu0 0.0
      %388 = vmatprep.subr.mxu0 0.0
      %389 = vmatpush1.msra.mxu0 0.0
      %390 = vmatprep.subr.mxu0 0.0
      %391 = vmatpush1.msra.mxu0 0.0
      %392 = vmatprep.subr.mxu0 0.0
      %393 = vmatpush1.msra.mxu0 0.0
      %394 = vmatprep.subr.mxu0 0.0
      %395 = vmatpush1.msra.mxu0 0.0
      %396 = vmatprep.subr.mxu0 0.0
      %397 = vmatpush1.msra.mxu0 0.0
      %398 = vmatprep.mubr.f32.mxu0 0.0
      %399 = vmatmul.mubr.f32.gmra.mrb[0].mxu0 %v222
      %v400 = vpop.f32.mrb[0].mxu0
      %v401 = vadd.f32 %v326, %v400
      %v402 = vpop.f32.mrb[0].mxu0
      %403 = vmatprep.mubr.f32.mxu0 0.0
      %404 = vmatmul.mubr.f32.gmra.mrb[0].mxu0 %v223
      %v405 = vpop.f32.mrb[0].mxu0
      %v406 = vadd.f32 %v331, %v405
      %v407 = vpop.f32.mrb[0].mxu0
      %408 = vdwg.mxu0
      %v409 = vld [vmem:[%s206 + $0x2] sm:$0xff]
      %v410 = vld [vmem:[%s206 + $0xa] sm:$0xff]
      %s411 = scalar_lea.vmem %s210, 256
      %v412 = vld [vmem:[%s411] sm:$0xff]
      %v413 = vld [vmem:[%s411 + $0x8] sm:$0xff]
      %v414 = vld [vmem:[%s411 + $0x10] sm:$0xff]
      %v415 = vld [vmem:[%s411 + $0x18] sm:$0xff]
      %v416 = vld [vmem:[%s411 + $0x20] sm:$0xff]
      %v417 = vld [vmem:[%s411 + $0x28] sm:$0xff]
      %v418 = vld [vmem:[%s411 + $0x30] sm:$0xff]
      %v419 = vld [vmem:[%s411 + $0x38] sm:$0xff]
      %v420 = vld [vmem:[%s411 + $0x40] sm:$0xff]
      %v421 = vld [vmem:[%s411 + $0x48] sm:$0xff]
      %v422 = vld [vmem:[%s411 + $0x50] sm:$0xff]
      %v423 = vld [vmem:[%s411 + $0x58] sm:$0xff]
      %v424 = vld [vmem:[%s411 + $0x60] sm:$0xff]
      %v425 = vld [vmem:[%s411 + $0x68] sm:$0xff]
      %v426 = vld [vmem:[%s411 + $0x70] sm:$0xff]
      %v427 = vld [vmem:[%s411 + $0x78] sm:$0xff]
      %428 = vmatprep.subr.mxu0 0.0
      %429 = vmatpush1.msra.mxu0 %v412
      %430 = vmatprep.subr.mxu0 0.0
      %431 = vmatpush1.msra.mxu0 %v413
      %432 = vmatprep.subr.mxu0 0.0
      %433 = vmatpush1.msra.mxu0 %v414
      %434 = vmatprep.subr.mxu0 0.0
      %435 = vmatpush1.msra.mxu0 %v415
      %436 = vmatprep.subr.mxu0 0.0
      %437 = vmatpush1.msra.mxu0 %v416
      %438 = vmatprep.subr.mxu0 0.0
      %439 = vmatpush1.msra.mxu0 %v417
      %440 = vmatprep.subr.mxu0 0.0
      %441 = vmatpush1.msra.mxu0 %v418
      %442 = vmatprep.subr.mxu0 0.0
      %443 = vmatpush1.msra.mxu0 %v419
      %444 = vmatprep.subr.mxu0 0.0
      %445 = vmatpush1.msra.mxu0 %v420
      %446 = vmatprep.subr.mxu0 0.0
      %447 = vmatpush1.msra.mxu0 %v421
      %448 = vmatprep.subr.mxu0 0.0
      %449 = vmatpush1.msra.mxu0 %v422
      %450 = vmatprep.subr.mxu0 0.0
      %451 = vmatpush1.msra.mxu0 %v423
      %452 = vmatprep.subr.mxu0 0.0
      %453 = vmatpush1.msra.mxu0 %v424
      %454 = vmatprep.subr.mxu0 0.0
      %455 = vmatpush1.msra.mxu0 %v425
      %456 = vmatprep.subr.mxu0 0.0
      %457 = vmatpush1.msra.mxu0 %v426
      %458 = vmatprep.subr.mxu0 0.0
      %459 = vmatpush1.msra.mxu0 %v427
      %460 = vmatprep.subr.mxu0 0.0
      %461 = vmatpush1.msra.mxu0 0.0
      %462 = vmatprep.subr.mxu0 0.0
      %463 = vmatpush1.msra.mxu0 0.0
      %464 = vmatprep.subr.mxu0 0.0
      %465 = vmatpush1.msra.mxu0 0.0
      %466 = vmatprep.subr.mxu0 0.0
      %467 = vmatpush1.msra.mxu0 0.0
      %468 = vmatprep.subr.mxu0 0.0
      %469 = vmatpush1.msra.mxu0 0.0
      %470 = vmatprep.subr.mxu0 0.0
      %471 = vmatpush1.msra.mxu0 0.0
      %472 = vmatprep.subr.mxu0 0.0
      %473 = vmatpush1.msra.mxu0 0.0
      %474 = vmatprep.subr.mxu0 0.0
      %475 = vmatpush1.msra.mxu0 0.0
      %476 = vmatprep.subr.mxu0 0.0
      %477 = vmatpush1.msra.mxu0 0.0
      %478 = vmatprep.subr.mxu0 0.0
      %479 = vmatpush1.msra.mxu0 0.0
      %480 = vmatprep.subr.mxu0 0.0
      %481 = vmatpush1.msra.mxu0 0.0
      %482 = vmatprep.subr.mxu0 0.0
      %483 = vmatpush1.msra.mxu0 0.0
      %484 = vmatprep.subr.mxu0 0.0
      %485 = vmatpush1.msra.mxu0 0.0
      %486 = vmatprep.subr.mxu0 0.0
      %487 = vmatpush1.msra.mxu0 0.0
      %488 = vmatprep.subr.mxu0 0.0
      %489 = vmatpush1.msra.mxu0 0.0
      %490 = vmatprep.subr.mxu0 0.0
      %491 = vmatpush1.msra.mxu0 0.0
      %492 = vmatprep.mubr.f32.mxu0 0.0
      %493 = vmatmul.mubr.f32.gmra.mrb[0].mxu0 %v409
      %v494 = vpop.f32.mrb[0].mxu0
      %v495 = vadd.f32 0.0, %v494
      %v496 = vpop.f32.mrb[0].mxu0
      %497 = vmatprep.mubr.f32.mxu0 0.0
      %498 = vmatmul.mubr.f32.gmra.mrb[0].mxu0 %v410
      %v499 = vpop.f32.mrb[0].mxu0
      %v500 = vadd.f32 0.0, %v499
      %v501 = vpop.f32.mrb[0].mxu0
      %502 = vdwg.mxu0
      %v503 = vadd.f32 %v401, %v495
      %v504 = vadd.f32 %v406, %v500
      %v505 = vld [vmem:[%s213] sm:$0x1]
      %v507 = vlaneseq
      %v508 = vshrl.u32 %v507, 7
      %v509 = vsub.s32 0, %v508
      %v510 = vrot.slane %v505, %v509
      %v512 = vadd.f32 %v503, %v510
      %v513 = vadd.f32 %v504, %v510
      %v514 = vmax.f32 %v512, 0.0
      %v515 = vmax.f32 %v513, 0.0
      %516 = vst [vmem:[%s221] sm:$0xff] %v514
      %517 = vst [vmem:[%s221 + $0x8] sm:$0xff] %v515
      %p518 = scmp.lt.s32.totalorder %s18, 1
      %s519 = scalar_select %p518, %s18, 1
      %p520 = scmp.lt.s32.totalorder %s19, 0
      %s521 = scalar_select %p520, %s19, 0
      %s522 = smul.addr %s519, 2
      %s523 = sadd.s32 %s521, %s522
      %s524 = smul.addr %s523, 8
      %s525 = scalar_lea.vmem %s3, %s524
      // Predicated region
      $region33: #{conv_relu.1} parent=31 // pred_check
        %p526 = pneg %p124
      $region34: #{conv_relu.1} parent=31 // pred_check_branch
        %528 = sbr.rel (%p526) target = $region36
      $region35: #{conv_relu.1} parent=31 // pred_region
        _
      $region36: #{conv_relu.1} parent=31 // pred_fallthru
        _
    $region32: #{conv_relu.1} parent=5 // pred_fallthru
      _
    %p529 = scmp.le.s32.totalorder 2, %s9
    // Predicated region
    $region37: #{conv_relu.1} parent=5 // pred_check
      %p530 = pneg %p529
    $region38: #{conv_relu.1} parent=5 // pred_check_branch
      %532 = sbr.rel (%p530) target = $region40
    $region39: #{conv_relu.1} parent=5 // pred_region
      %s533 = ssub.s32 %s9, 2
      // Predicated region
      $region41: #{conv_relu.1} parent=39 // pred_check
        %p534 = pneg %p130
      $region42: #{conv_relu.1} parent=39 // pred_check_branch
        %536 = sbr.rel (%p534) target = $region44
      $region43: #{conv_relu.1} parent=39 // pred_region
        %p537 = scmp.lt.s32.totalorder %s20, 1
        %s538 = scalar_select %p537, %s20, 1
        %p539 = scmp.lt.s32.totalorder %s21, 0
        %s540 = scalar_select %p539, %s21, 0
        %s541 = smul.addr %s538, 2
        %s542 = sadd.s32 %s540, %s541
        %s543 = smul.addr %s542, 8
        %s544 = scalar_lea.vmem %s3, %s543
      $region44: #{conv_relu.1} parent=39 // pred_fallthru
        _
    $region40: #{conv_relu.1} parent=5 // pred_fallthru
      _
  $region6: #{conv_relu.1} parent=0 // loop_footer
    %s13 = sadd.s32 1, %s9
  $region7: #{conv_relu.1} parent=0 // loop_footer_branch
    %8 = sbr.rel target = $region3
  $region8: #{conv_relu.1} parent=0 // loop_exit
    _

</llo_original>
